<compile_context>
chip_gen: v7x
topology: tpu7x:2x2x1
jax: 0.10.0
libtpu: 0.0.40
codegen_flags: <defaults>
</compile_context>

<pallas_src>
import functools

import jax
import jax.numpy as jnp
from jax.experimental import pallas as pl
from jax.experimental.pallas import tpu as pltpu


def _round_up(x, m):
    return (x + m - 1) // m * m


def _tpu_vmem_and_cores():
    """Best-effort per-core VMEM capacity (bytes) and TensorCore count."""
    cap = None
    cores = 1
    try:
        info = pltpu.get_tpu_info()
        cap = getattr(info, "vmem_capacity_bytes", None)
        for name in ("num_cores", "tensorcores_per_chip", "cores_per_chip",
                     "num_tensorcores"):
            v = getattr(info, name, None)
            if isinstance(v, int) and v > 0:
                cores = v
                break
    except Exception:
        pass
    if not isinstance(cap, int) or cap <= 0:
        cap = 64 * 1024 * 1024  # conservative fallback: v7x per-TC capacity
    return cap, cores


def _mae_kernel(pred_ref, labels_ref, out_ref, acc_ref, *,
                n_total, block_rows, inner_steps):
    """Grid = (parallel row-chunks, inner row-tile steps)."""
    p = pl.program_id(0)
    k = pl.program_id(1)

    @pl.when(k == 0)
    def _():
        acc_ref[...] = jnp.zeros_like(acc_ref)

    x = pred_ref[...].astype(jnp.float32)                     # (TM, C)
    m = jnp.max(x, axis=-1, keepdims=True)                    # (TM, 1)
    e = jnp.exp(x - m)                                        # (TM, C)
    sum_e = jnp.sum(e, axis=-1, keepdims=True)                # (TM, 1)

    labels = labels_ref[...]                                  # (TM, 1) int32
    cls = jax.lax.broadcasted_iota(jnp.int32, x.shape, 1)     # (TM, C)
    picked_e = jnp.sum(jnp.where(cls == labels, e, 0.0),
                       axis=-1, keepdims=True)                # (TM, 1)

    # Exact divide on (TM, 1) values — essentially free, no (TM, C) divide.
    ratio = picked_e / sum_e                                  # == p[n, label[n]]

    # Mask rows past the end of the batch (ragged tail and any clamped
    # duplicate block on the parallel split).  Keep this a SELECT so NaN/Inf
    # from out-of-bounds garbage rows is dropped, never multiply-by-mask.
    block_idx = p * inner_steps + k
    row = block_idx * block_rows + jax.lax.broadcasted_iota(
        jnp.int32, ratio.shape, 0)
    ratio = jnp.where(row < n_total, ratio, 0.0)

    # One cheap cross-sublane reduce per step into a tiny accumulator
    # (hidden under per-step overhead; frees the old (block, 1) VMEM acc).
    acc_ref[...] += jnp.sum(ratio, keepdims=True)             # (1, 1)

    @pl.when(k == inner_steps - 1)
    def _():
        lane = jax.lax.broadcasted_iota(jnp.int32, (1, 128), 1)
        # Lane-dense (1, 128) output block: partial sum in lane 0, zeros else.
        out_ref[...] = jnp.where(lane == 0, acc_ref[...], 0.0)


def mean_absolute_error(pred, labels, num_classes, scale=1.0, *,
                        block_rows=None, num_parallel=None):
    """Pallas TPU implementation of MeanAbsoluteError.forward.

    pred:   (N, C) float array of logits
    labels: (N,)   int array of class indices in [0, num_classes)
    returns scalar float32
    """
    n, c = pred.shape
    assert c == num_classes

    # ---- generation-aware VMEM budget -------------------------------------
    vmem_cap, n_cores = _tpu_vmem_and_cores()
    # ~3/4 of per-core physical VMEM: v7x(64 MiB)->48 MiB, v5e/v6e(128)->96 MiB.
    vmem_budget = min((vmem_cap * 3) // 4, 96 * 1024 * 1024)

    # Per-row double-buffered footprint in the *input* dtypes (f32 cast is in
    # vregs).  Lane padding: pred pads C to round_up(C,128); labels (int32)
    # pad their last dim to 128.  The accumulator is a single (1,1) scratch.
    pred_itemsize = jnp.dtype(pred.dtype).itemsize
    bytes_per_row = 2 * _round_up(c, 128) * pred_itemsize + 2 * 128 * 4
    # Headroom for output block, (1,1) acc, and compiler-internal scratch.
    usable = max(vmem_budget - (2 << 20), bytes_per_row * 8)
    max_rows = max(8, (usable // bytes_per_row) // 8 * 8)

    if block_rows is None:
        block_rows = max_rows
    block_rows = min(block_rows, max_rows)

    if n <= block_rows:
        block = n                              # full-extent row block
    else:
        block = max(8, (block_rows // 8) * 8)  # sublane-aligned row tile

    total_blocks = pl.cdiv(n, block)
    if num_parallel is None:
        num_parallel = 2 if n_cores >= 2 else 1   # 2-TC parts (v7x) only
    n_par = max(1, min(num_parallel, total_blocks))
    inner = pl.cdiv(total_blocks, n_par)

    labels2d = labels.astype(jnp.int32).reshape(n, 1)

    def row_block(p, k):
        # Clamp so an over-hanging block on the parallel split re-reads the
        # last valid block; its rows are fully masked inside the kernel.
        return (jnp.minimum(p * inner + k, total_blocks - 1), 0)

    kernel = functools.partial(_mae_kernel, n_total=n, block_rows=block,
                               inner_steps=inner)

    cost = pl.CostEstimate(
        flops=6 * n * c,
        transcendentals=n * c,
        bytes_accessed=n * c * pred_itemsize + n * 4 + n_par * 128 * 4,
    )

    partials = pl.pallas_call(
        kernel,
        out_shape=jax.ShapeDtypeStruct((1, n_par * 128), jnp.float32),
        grid_spec=pltpu.PrefetchScalarGridSpec(
            num_scalar_prefetch=0,
            grid=(n_par, inner),
            in_specs=[
                pl.BlockSpec((block, c), row_block),     # pred row tile
                pl.BlockSpec((block, 1), row_block),     # labels row tile
            ],
            out_specs=pl.BlockSpec((1, 128), lambda p, k: (0, p)),
            scratch_shapes=[pltpu.VMEM((1, 1), jnp.float32)],
        ),
        compiler_params=pltpu.CompilerParams(
            dimension_semantics=("parallel", "arbitrary"),
            vmem_limit_bytes=int(vmem_budget),
        ),
        cost_estimate=cost,
    )(pred, labels2d)

    # sum over rows of p[n, label[n]]; mae.mean() == (N - picked_sum) / N.
    picked_sum = jnp.sum(partials)
    return (scale * (n - picked_sum) / n).astype(jnp.float32)


def _reference(pred, labels, num_classes, scale=1.0):
    p = jax.nn.softmax(pred.astype(jnp.float32), axis=1)
    onehot = jax.nn.one_hot(labels, num_classes, dtype=jnp.float32)
    mae = 1.0 - jnp.sum(onehot * p, axis=1)
    return scale * jnp.mean(mae)


if __name__ == "__main__":
    key = jax.random.PRNGKey(0)
    num_classes = 10
    scale = 1.0
    k1, k2, k3, k4 = jax.random.split(key, 4)

    # Small single-tile case (auto block_rows, auto num_parallel).
    pred = jax.random.normal(k1, (16, num_classes), dtype=jnp.float32)
    labels = jax.random.randint(k2, (16,), 0, num_classes, dtype=jnp.int32)
    out = jax.block_until_ready(mean_absolute_error(pred, labels, num_classes, scale))
    ref = jax.block_until_ready(_reference(pred, labels, num_classes, scale))
    assert jnp.allclose(out, ref, atol=2e-3, rtol=2e-3), (out, ref)

    # Ragged multi-tile case (exercises tail masking + parallel split/clamp).
    pred2 = jax.random.normal(k3, (300, num_classes), dtype=jnp.float32)
    labels2 = jax.random.randint(k4, (300,), 0, num_classes, dtype=jnp.int32)
    out2 = jax.block_until_ready(
        mean_absolute_error(pred2, labels2, num_classes, scale, block_rows=128))
    ref2 = jax.block_until_ready(_reference(pred2, labels2, num_classes, scale))
    assert jnp.allclose(out2, ref2, atol=2e-3, rtol=2e-3), (out2, ref2)

    print("KERNEL_OK")
</pallas_src>

<mosaic_0001>
module attributes {stable_mosaic.version = 11 : i64} {
  func.func @_mae_kernel(%arg0: i32, %arg1: i32, %arg2: memref<16x10xf32, #tpu.memory_space<vmem>>, %arg3: memref<16x1xi32, #tpu.memory_space<vmem>>, %arg4: memref<1x128xf32, #tpu.memory_space<vmem>>, %arg5: memref<1x1xf32, #tpu.memory_space<vmem>>) attributes {dimension_semantics = [#tpu.dimension_semantics<parallel>, #tpu.dimension_semantics<arbitrary>], iteration_bounds = array<i64: 1, 1>, scalar_prefetch = 0 : i64, scratch_operands = 1 : i64, tpu.core_type = #tpu.core_type<tc>, window_params = [{transform_indices = @transform_0, window_bounds = array<i64: 16, 10>}, {transform_indices = @transform_1, window_bounds = array<i64: 16, 1>}, {transform_indices = @transform_2, window_bounds = array<i64: 1, 128>}]} {
    %c0_i32 = arith.constant 0 : i32
    %0 = arith.cmpi eq, %arg1, %c0_i32 : i32
    %1 = arith.extui %0 : i1 to i32
    %c0_i32_0 = arith.constant 0 : i32
    %2 = arith.cmpi ne, %1, %c0_i32_0 : i32
    scf.if %2 {
      %cst_16 = arith.constant 0.000000e+00 : f32
      %41 = vector.broadcast %cst_16 : f32 to vector<1x1xf32>
      %c0_17 = arith.constant 0 : index
      %c0_18 = arith.constant 0 : index
      %42 = vector.load %arg5[%c0_17, %c0_18] : memref<1x1xf32, #tpu.memory_space<vmem>>, vector<1x1xf32>
      tpu.vector_store %arg5[%c0_17, %c0_18], %41 {strides = array<i32>} : memref<1x1xf32, #tpu.memory_space<vmem>>, vector<1x1xf32>,
    } else {
    }
    %c0 = arith.constant 0 : index
    %c0_1 = arith.constant 0 : index
    %3 = vector.load %arg2[%c0, %c0_1] : memref<16x10xf32, #tpu.memory_space<vmem>>, vector<16x10xf32>
    %cst = arith.constant dense<0xFF800000> : vector<16xf32>
    %4 = vector.multi_reduction <maximumf>, %3, %cst [1] : vector<16x10xf32> to vector<16xf32>
    %5 = vector.shape_cast %4 : vector<16xf32> to vector<16x1xf32>
    %6 = vector.broadcast %5 : vector<16x1xf32> to vector<16x10xf32>
    %7 = arith.subf %3, %6 : vector<16x10xf32>
    %8 = math.exp %7 : vector<16x10xf32>
    %cst_2 = arith.constant dense<0.000000e+00> : vector<16xf32>
    %9 = vector.multi_reduction <add>, %8, %cst_2 [1] : vector<16x10xf32> to vector<16xf32>
    %10 = vector.shape_cast %9 : vector<16xf32> to vector<16x1xf32>
    %c0_3 = arith.constant 0 : index
    %c0_4 = arith.constant 0 : index
    %11 = vector.load %arg3[%c0_3, %c0_4] : memref<16x1xi32, #tpu.memory_space<vmem>>, vector<16x1xi32>
    %12 = tpu.iota {dimensions = array<i32: 1>} : vector<16x10xi32>
    %13 = vector.broadcast %11 : vector<16x1xi32> to vector<16x10xi32>
    %14 = arith.cmpi eq, %12, %13 : vector<16x10xi32>
    %cst_5 = arith.constant 0.000000e+00 : f32
    %15 = vector.broadcast %cst_5 : f32 to vector<16x10xf32>
    %16 = arith.select %14, %8, %15 : vector<16x10xi1>, vector<16x10xf32>
    %cst_6 = arith.constant dense<0.000000e+00> : vector<16xf32>
    %17 = vector.multi_reduction <add>, %16, %cst_6 [1] : vector<16x10xf32> to vector<16xf32>
    %18 = vector.shape_cast %17 : vector<16xf32> to vector<16x1xf32>
    %19 = arith.divf %18, %10 : vector<16x1xf32>
    %c1_i32 = arith.constant 1 : i32
    %20 = arith.muli %arg0, %c1_i32 : i32
    %21 = arith.addi %20, %arg1 : i32
    %c16_i32 = arith.constant 16 : i32
    %22 = arith.muli %21, %c16_i32 : i32
    %23 = tpu.iota {dimensions = array<i32: 0>} : vector<16x1xi32>
    %24 = vector.broadcast %22 : i32 to vector<16x1xi32>
    %25 = arith.addi %24, %23 : vector<16x1xi32>
    %c16_i32_7 = arith.constant 16 : i32
    %26 = vector.broadcast %c16_i32_7 : i32 to vector<16x1xi32>
    %27 = arith.cmpi slt, %25, %26 : vector<16x1xi32>
    %cst_8 = arith.constant 0.000000e+00 : f32
    %28 = vector.broadcast %cst_8 : f32 to vector<16x1xf32>
    %29 = arith.select %27, %19, %28 : vector<16x1xi1>, vector<16x1xf32>
    %c0_9 = arith.constant 0 : index
    %c0_10 = arith.constant 0 : index
    %30 = vector.load %arg5[%c0_9, %c0_10] : memref<1x1xf32, #tpu.memory_space<vmem>>, vector<1x1xf32>
    %31 = vector.shape_cast %29 : vector<16x1xf32> to vector<1x16x1xf32>
    %cst_11 = arith.constant dense<0.000000e+00> : vector<1xf32>
    %32 = vector.multi_reduction <add>, %31, %cst_11 [1, 2] : vector<1x16x1xf32> to vector<1xf32>
    %33 = vector.shape_cast %32 : vector<1xf32> to vector<1x1x1xf32>
    %34 = vector.extract %33[0, 0, 0] : f32 from vector<1x1x1xf32>
    %35 = vector.broadcast %34 : f32 to vector<1x1xf32>
    %36 = arith.addf %30, %35 : vector<1x1xf32>
    %c0_12 = arith.constant 0 : index
    %c0_13 = arith.constant 0 : index
    %37 = vector.load %arg5[%c0_12, %c0_13] : memref<1x1xf32, #tpu.memory_space<vmem>>, vector<1x1xf32>
    tpu.vector_store %arg5[%c0_12, %c0_13], %36 {strides = array<i32>} : memref<1x1xf32, #tpu.memory_space<vmem>>, vector<1x1xf32>,
    %c0_i32_14 = arith.constant 0 : i32
    %38 = arith.cmpi eq, %arg1, %c0_i32_14 : i32
    %39 = arith.extui %38 : i1 to i32
    %c0_i32_15 = arith.constant 0 : i32
    %40 = arith.cmpi ne, %39, %c0_i32_15 : i32
    scf.if %40 {
      %41 = tpu.iota {dimensions = array<i32: 1>} : vector<1x128xi32>
      %c0_i32_16 = arith.constant 0 : i32
      %42 = vector.broadcast %c0_i32_16 : i32 to vector<1x128xi32>
      %43 = arith.cmpi eq, %41, %42 : vector<1x128xi32>
      %c0_17 = arith.constant 0 : index
      %c0_18 = arith.constant 0 : index
      %44 = vector.load %arg5[%c0_17, %c0_18] : memref<1x1xf32, #tpu.memory_space<vmem>>, vector<1x1xf32>
      %cst_19 = arith.constant 0.000000e+00 : f32
      %45 = vector.shape_cast %44 : vector<1x1xf32> to vector<1x1xf32>
      %46 = vector.broadcast %45 : vector<1x1xf32> to vector<1x128xf32>
      %47 = vector.broadcast %cst_19 : f32 to vector<1x128xf32>
      %48 = arith.select %43, %46, %47 : vector<1x128xi1>, vector<1x128xf32>
      %c0_20 = arith.constant 0 : index
      %c0_21 = arith.constant 0 : index
      %49 = vector.load %arg4[%c0_20, %c0_21] : memref<1x128xf32, #tpu.memory_space<vmem>>, vector<1x128xf32>
      tpu.vector_store %arg4[%c0_20, %c0_21], %48 {strides = array<i32>} : memref<1x128xf32, #tpu.memory_space<vmem>>, vector<1x128xf32>,
    } else {
    }
    return
  }
  func.func @transform_0(%arg0: i32, %arg1: i32) -> (i32, i32) {
    %c1_i32 = arith.constant 1 : i32
    %0 = arith.muli %arg0, %c1_i32 : i32
    %1 = arith.addi %0, %arg1 : i32
    %c0_i32 = arith.constant 0 : i32
    %2 = arith.minsi %1, %c0_i32 : i32
    %c0_i32_0 = arith.constant 0 : i32
    %c0_i32_1 = arith.constant 0 : i32
    return %2, %c0_i32_0 : i32, i32
  }
  func.func @transform_1(%arg0: i32, %arg1: i32) -> (i32, i32) {
    %c1_i32 = arith.constant 1 : i32
    %0 = arith.muli %arg0, %c1_i32 : i32
    %1 = arith.addi %0, %arg1 : i32
    %c0_i32 = arith.constant 0 : i32
    %2 = arith.minsi %1, %c0_i32 : i32
    %c0_i32_0 = arith.constant 0 : i32
    %c0_i32_1 = arith.constant 0 : i32
    return %2, %c0_i32_0 : i32, i32
  }
  func.func @transform_2(%arg0: i32, %arg1: i32) -> (i32, i32) {
    %c0_i32 = arith.constant 0 : i32
    %c0_i32_0 = arith.constant 0 : i32
    return %c0_i32, %arg0 : i32, i32
  }
}

</mosaic_0001>

<llo_original>
// kernel: tpu_custom_call.1
$region0: #{tpu_custom_call.1}
  #allocation0 [shape = 'u32[]', space=smem, size = 0x4, offset = 0x4, fixed_abs, tag = 'smem constant byte address 0x4 - core index']
  #allocation1 [shape = 'u32[144,128]{1,0:T(1,128)}', space=vmem, size = 0x12000, scoped, tag = 'internal scratch']
  #allocation2 [shape = 'f32[1,1]{1,0:T(1,128)}', space=vmem, size = 0x200, scoped, tag = 'scratch operand']
  %s0 = inlined_call_operand.vmem [shape: f32[16,10], index: 0, kind: input, shape index: {}]
  %s1 = inlined_call_operand.vmem [shape: s32[16,1], index: 1, kind: input, shape index: {}]
  %s2 = inlined_call_operand.hbm [shape: f32[1,128], index: 2, kind: output, shape index: {}]
  %s3 = sld [smem:[#allocation0]]
  $region26: #{tpu_custom_call.1} parent=0
    _
  %s5 = ssub.s32 1, %s3
  %s6 = scalar_select 0, %s5, %s3
  $region1: #{tpu_custom_call.1} parent=0
    #allocation3 [shape = 'u8[512]{0}', space=vmem, size = 0x400, scoped, tag = 'output window, operand 0, single buffered']
    #allocation4 [shape = 's32[1]{0}', space=sflag, size = 0x4, scoped, tag = 'scoped memory for tpu_custom_call.1']
    %7 = vsyncpa [#allocation4], 0
    // Predicated region
    $region2: #{tpu_custom_call.1} parent=1 // pred_check
      _
    $region3: #{tpu_custom_call.1} parent=1 // pred_check_branch
      %9 = sbr.rel (0) target = $region5
    $region4: #{tpu_custom_call.1} parent=1 // pred_region
      %s10 = sadd.s32 0, 0
      %p11 = scmp.lt.s32.totalorder %s10, 0
      %s12 = scalar_select %p11, %s10, 0
      %s13 = smul.u32 2, %s12
      %p14 = scmp.lt.s32.totalorder %s13, 1
      %s15 = scalar_select %p14, %s13, 1
      %s16 = smul.addr %s15, 8
      %s17 = scalar_lea.vmem %s0, %s16
      %s18 = sadd.s32 0, 0
      %p19 = scmp.lt.s32.totalorder %s18, 0
      %s20 = scalar_select %p19, %s18, 0
      %s21 = smul.u32 2, %s20
    $region5: #{tpu_custom_call.1} parent=1 // pred_fallthru
      _
    // Predicated region
    $region6: #{tpu_custom_call.1} parent=1 // pred_check
      _
    $region7: #{tpu_custom_call.1} parent=1 // pred_check_branch
      %23 = sbr.rel (0) target = $region9
    $region8: #{tpu_custom_call.1} parent=1 // pred_region
      %s24 = sadd.s32 0, 0
      %p25 = scmp.lt.s32.totalorder %s24, 0
      %s26 = scalar_select %p25, %s24, 0
      %s27 = smul.u32 2, %s26
      %p28 = scmp.lt.s32.totalorder %s27, 1
      %s29 = scalar_select %p28, %s27, 1
      %s30 = smul.addr %s29, 8
      %s31 = scalar_lea.vmem %s1, %s30
      %s32 = sadd.s32 0, 0
      %p33 = scmp.lt.s32.totalorder %s32, 0
      %s34 = scalar_select %p33, %s32, 0
      %s35 = smul.u32 2, %s34
    $region9: #{tpu_custom_call.1} parent=1 // pred_fallthru
      _
    %s36 = sadd.s32 0, 0
    %p37 = scmp.lt.s32.totalorder %s36, 0
    %s38 = scalar_select %p37, %s36, 0
    %s39 = smul.u32 2, %s38
    %p40 = scmp.lt.s32.totalorder %s39, 1
    %s41 = scalar_select %p40, %s39, 1
    %s42 = smul.addr %s41, 8
    %s43 = scalar_lea.vmem %s0, %s42
    %s44 = sadd.s32 0, 0
    %p45 = scmp.lt.s32.totalorder %s44, 0
    %s46 = scalar_select %p45, %s44, 0
    %s47 = smul.u32 2, %s46
    %p48 = scmp.lt.s32.totalorder %s47, 1
    %s49 = scalar_select %p48, %s47, 1
    %s50 = smul.addr %s49, 8
    %s51 = scalar_lea.vmem %s1, %s50
    %s52 = sadd.s32 0, 0
    %p53 = scmp.lt.s32.totalorder %s52, 0
    %s54 = scalar_select %p53, %s52, 0
    %s55 = smul.u32 2, %s54
    %p56 = scmp.lt.s32.totalorder %s55, 1
    %s57 = scalar_select %p56, %s55, 1
    %s58 = smul.addr %s57, 8
    %s59 = scalar_lea.vmem %s0, %s58
    %s60 = sadd.s32 0, 0
    %p61 = scmp.lt.s32.totalorder %s60, 0
    %s62 = scalar_select %p61, %s60, 0
    %s63 = smul.u32 2, %s62
    %s64 = sadd.s32 0, 0
    %p65 = scmp.lt.s32.totalorder %s64, 0
    %s66 = scalar_select %p65, %s64, 0
    %s67 = smul.u32 2, %s66
    %p68 = scmp.lt.s32.totalorder %s67, 1
    %s69 = scalar_select %p68, %s67, 1
    %s70 = smul.addr %s69, 8
    %s71 = scalar_lea.vmem %s1, %s70
    %s72 = sadd.s32 0, 0
    %p73 = scmp.lt.s32.totalorder %s72, 0
    %s74 = scalar_select %p73, %s72, 0
    %s75 = smul.u32 2, %s74
    %p76 = scmp.eq.s32.totalorder 0, 0
    // Predicated region
    $region10: #{tpu_custom_call.1} parent=1 // pred_check
      %p77 = pneg %p76
    $region11: #{tpu_custom_call.1} parent=1 // pred_check_branch
      %79 = sbr.rel (%p77) target = $region13
    $region12: #{tpu_custom_call.1} parent=1 // pred_region
      %vm80 = vcmask 0
      %81 = vst.msk [vmem:[#allocation2] sm:$0x1] %vm80, 0.0
    $region13: #{tpu_custom_call.1} parent=1 // pred_fallthru
      _
    %v82 = vld [vmem:[%s59] sm:$0xff]
    %v83 = vld [vmem:[%s59 + $0x8] sm:$0xff]
    %vm84 = vcmask 80896
    %v85 = vsel %vm84, %v82, -inf
    %86 = vmax.xlane.f32.xlu0 %v85
    %v87 = vpop.xlane.xlu0 %86
    %v88 = vsel %vm84, %v83, -inf
    %89 = vmax.xlane.f32.xlu0 %v88
    %v90 = vpop.xlane.xlu0 %89
    %v91 = vsub.f32 %v82, %v87
    %v92 = vsub.f32 %v83, %v90
    %v93 = vmul.f32 %v91, 1.442695
    %v94 = vpow.pop %v93
    %v95 = vmul.f32 %v92, 1.442695
    %v96 = vpow.pop %v95
    %v97 = vsel %vm84, %v94, 0.0
    %98 = vadd.xlane.f32.xlu0 %v97
    %v99 = vpop.xlane.xlu0 %98
    %v100 = vsel %vm84, %v96, 0.0
    %101 = vadd.xlane.f32.xlu0 %v100
    %v102 = vpop.xlane.xlu0 %101
    %v103 = vld [vmem:[%s71] sm:$0xff]
    %v104 = vld [vmem:[%s71 + $0x8] sm:$0xff]
    %v105 = vlaneseq
    %v106 = vand.u32 %v105, 127
    %107 = vset.pattern.permute.xlu0 0
    %108 = vperm.xlu0 %107, %v103
    %v109 = vpop.permute.xlu0 %108
    %110 = vset.pattern.permute.xlu0 0
    %111 = vperm.xlu0 %110, %v104
    %v112 = vpop.permute.xlu0 %111
    %vm113 = vcmp.eq.s32.totalorder %v106, %v109
    %vm114 = vcmp.eq.s32.totalorder %v106, %v112
    %v115 = vsel %vm113, %v94, 0.0
    %v116 = vsel %vm114, %v96, 0.0
    %v117 = vsel %vm84, %v115, 0.0
    %118 = vadd.xlane.f32.xlu0 %v117
    %v119 = vpop.xlane.xlu0 %118
    %v120 = vsel %vm84, %v116, 0.0
    %121 = vadd.xlane.f32.xlu0 %v120
    %v122 = vpop.xlane.xlu0 %121
    %v123 = vrcp.pop %v99
    %v124 = vmul.f32 %v119, %v123
    %v125 = vrcp.pop %v102
    %v126 = vmul.f32 %v122, %v125
    %s127 = sadd.s32 0, 0
    %s128 = smul.u32 %s127, 16
    %v129 = vlaneseq
    %v130 = vshrl.u32 %v129, 7
    %v131 = vadd.s32 %v130, 8
    %v132 = vstv %s128
    %v133 = vadd.s32 %v132, %v130
    %v134 = vadd.s32 %v132, %v131
    %vm135 = vcmp.lt.s32.totalorder %v133, 16
    %vm136 = vcmp.lt.s32.totalorder %v134, 16
    %v137 = vsel %vm135, %v124, 0.0
    %v138 = vsel %vm136, %v126, 0.0
    %v139 = vld [vmem:[#allocation2] sm:$0x1]
    %vm140 = vcmask 7168
    %v141 = vsel %vm140, %v137, 0.0
    %v142 = vsel %vm140, %v138, 0.0
    %v143 = vadd.f32 %v141, %v142
    %144 = vadd.xlane.f32.xlu0 %v143
    %v145 = vpop.xlane.xlu0 %144
    %v146 = vrot.slane %v145, 4
    %v147 = vadd.f32 %v145, %v146
    %v148 = vrot.slane %v147, 2
    %v149 = vadd.f32 %v147, %v148
    %v150 = vrot.slane %v149, 1
    %v151 = vadd.f32 %v149, %v150
    %s152 = vtos %v151
    %v153 = vstv %s152
    %v154 = vadd.f32 %v139, %v153
    %vm155 = vcmask 0
    %156 = vst.msk [vmem:[#allocation2] sm:$0x1] %vm155, %v154
    // Predicated region
    $region14: #{tpu_custom_call.1} parent=1 // pred_check
      %p157 = pneg %p76
    $region15: #{tpu_custom_call.1} parent=1 // pred_check_branch
      %159 = sbr.rel (%p157) target = $region17
    $region16: #{tpu_custom_call.1} parent=1 // pred_region
      %vm160 = vcmp.eq.s32.totalorder %v106, 0
      %v161 = vld [vmem:[#allocation2] sm:$0x1]
      %163 = vset.pattern.permute.xlu0 0
      %164 = vperm.xlu0 %163, %v161
      %v165 = vpop.permute.xlu0 %164
      %v167 = vlaneseq
      %v168 = vshrl.u32 %v167, 7
      %v169 = vsub.s32 0, %v168
      %v170 = vrot.slane %v165, %v169
      %v171 = vsel %vm160, %v170, 0.0
      %172 = vst [vmem:[#allocation3] sm:$0x1] %v171
    $region17: #{tpu_custom_call.1} parent=1 // pred_fallthru
      _
    // Predicated region
    $region18: #{tpu_custom_call.1} parent=1 // pred_check
      _
    $region19: #{tpu_custom_call.1} parent=1 // pred_check_branch
      %174 = sbr.rel (0) target = $region21
    $region20: #{tpu_custom_call.1} parent=1 // pred_region
      %s176 = ssub.s32 16, 16
      %177 = vsyncadd [#allocation4], %s176
      %s179 = sshll.u32 [#allocation3], 4
      %s180 = int_to_ptr.vmem [resolvable:$true] %s179
      %182 = dma.vmem_to_hbm [thread:$0]  %s180, 16, %s2, [#allocation4]
    $region21: #{tpu_custom_call.1} parent=1 // pred_fallthru
      _
    // Predicated region
    $region22: #{tpu_custom_call.1} parent=1 // pred_check
      _
    $region23: #{tpu_custom_call.1} parent=1 // pred_check_branch
      %184 = sbr.rel (0) target = $region25
    $region24: #{tpu_custom_call.1} parent=1 // pred_region
      %185 = dma.done [#allocation4], 16
    $region25: #{tpu_custom_call.1} parent=1 // pred_fallthru
      _
    %186 = vsyncpa [#allocation4], 1

</llo_original>
